<compile_context>
chip_gen: v7x
topology: tpu7x:2x2x1
jax: 0.10.0
libtpu: 0.0.40
codegen_flags: <defaults>
</compile_context>

<pallas_src>
import functools
import math

import jax
import jax.numpy as jnp
from jax.experimental import pallas as pl
from jax.experimental.pallas import tpu as pltpu

HIDDEN = 128


def _round_up(a, b):
    return (a + b - 1) // b * b


def _a2c_kernel(x_ref, wf_ref, bf_ref, wh_ref, bh_ref, out_ref, *, n_out):
    # --- features: Linear + ReLU (MXU matmul, f32 accumulate) ---
    h = jnp.dot(x_ref[...], wf_ref[...], preferred_element_type=jnp.float32)
    h = jnp.maximum(h + bf_ref[...], 0.0)                            # [TB, 128]

    # --- fused heads: one narrow [128, head_w] matmul ---
    z = jnp.dot(h, wh_ref[...], preferred_element_type=jnp.float32) + bh_ref[...]

    # Per-column activation: tanh | softplus | identity (critic + padding).
    col = jax.lax.broadcasted_iota(jnp.int32, z.shape, 1)
    tanh_z = jnp.tanh(z)
    # PyTorch Softplus defaults: beta=1, threshold=20 (clamp avoids exp overflow).
    sp_z = jnp.where(z > 20.0, z, jnp.log1p(jnp.exp(jnp.minimum(z, 20.0))))
    out_ref[...] = jnp.where(col < n_out, tanh_z,
                             jnp.where(col < 2 * n_out, sp_z, z))


def fuse_params(params):
    """Build the fused head weight/bias ONCE (call at init / after each param
    update), so the concat+pad never runs inside the per-step forward path."""
    n_out = params["w_mu"].shape[1]
    hidden = params["w_f"].shape[1]
    head_w = _round_up(2 * n_out + 1, 8)           # mu | var | critic, lane-padded to 8
    w_heads = jnp.concatenate(
        [params["w_mu"], params["w_var"], params["w_c"]], axis=1)
    w_heads = jnp.pad(w_heads, ((0, 0), (0, head_w - w_heads.shape[1])))
    b_heads = jnp.concatenate(
        [params["b_mu"], params["b_var"], params["b_c"]], axis=1)
    b_heads = jnp.pad(b_heads, ((0, 0), (0, head_w - b_heads.shape[1])))
    return {
        "w_f": params["w_f"], "b_f": params["b_f"],
        "w_heads": w_heads, "b_heads": b_heads,
        "n_out": n_out, "hidden": hidden, "head_w": head_w,
    }


def _choose_tb(batch, *, max_tb=1024, min_tiles=1):
    """Batch-tile policy: tb is a multiple of 8, padding is minimal (next
    multiple of 8), tiles are capped at max_tb rows, and at least `min_tiles`
    tiles are produced when possible (set min_tiles=2 on v7x so both
    TensorCores get work via the 'parallel' grid axis)."""
    b8 = _round_up(max(batch, 1), 8)
    n_tiles = max(min_tiles, pl.cdiv(b8, max_tb))
    tb = _round_up(pl.cdiv(b8, n_tiles), 8)
    nb = pl.cdiv(b8, tb)
    return tb, nb


def a2c_forward(x, fused, *, max_tb=1024, min_tiles=1, split=True):
    """x: [B, in_dim] float32. fused: output of fuse_params(params).

    Returns (mu [B, n_out], var [B, n_out], critic [B, 1]); or, with
    split=False, the packed [B, 2*n_out+1] slab (mu | var | critic)."""
    B, din = x.shape
    n_out = fused["n_out"]
    hidden = fused["hidden"]
    head_w = fused["head_w"]

    tb, nb = _choose_tb(B, max_tb=max_tb, min_tiles=min_tiles)
    bp = nb * tb
    if bp != B:
        x = jnp.pad(x, ((0, bp - B), (0, 0)))

    kernel = functools.partial(_a2c_kernel, n_out=n_out)

    # Grid-invariant full blocks for weights/biases: VMEM-resident across all
    # batch tiles.
    def inv(shape):
        return pl.BlockSpec(shape, lambda i: (0,) * len(shape))

    out = pl.pallas_call(
        kernel,
        out_shape=jax.ShapeDtypeStruct((bp, head_w), jnp.float32),
        grid=(nb,),
        in_specs=[
            pl.BlockSpec((tb, din), lambda i: (i, 0)),   # x: tiled over batch
            inv((din, hidden)),                          # w_f
            inv((1, hidden)),                            # b_f
            inv((hidden, head_w)),                       # fused head weight
            inv((1, head_w)),                            # fused head bias
        ],
        out_specs=pl.BlockSpec((tb, head_w), lambda i: (i, 0)),
        compiler_params=pltpu.CompilerParams(
            dimension_semantics=("parallel",)),
    )(x, fused["w_f"], fused["b_f"], fused["w_heads"], fused["b_heads"])

    if not split:
        return out[:B, :2 * n_out + 1]
    mu = out[:B, :n_out]
    var = out[:B, n_out:2 * n_out]
    critic = out[:B, 2 * n_out:2 * n_out + 1]
    return mu, var, critic


def init_params(key, in_dim, n_out, hidden=HIDDEN):
    """Deterministic init mirroring the PyTorch module: xavier_uniform_ for the
    feature-layer weight; PyTorch-default (bound = 1/sqrt(fan_in)) for the rest."""
    ks = jax.random.split(key, 8)

    def xavier_uniform(k, fan_in, fan_out):
        bound = math.sqrt(6.0 / (fan_in + fan_out))
        return jax.random.uniform(k, (fan_in, fan_out), jnp.float32, -bound, bound)

    def torch_default(k, fan_in, fan_out):
        bound = 1.0 / math.sqrt(fan_in)
        return jax.random.uniform(k, (fan_in, fan_out), jnp.float32, -bound, bound)

    def torch_bias(k, fan_in, fan_out):
        bound = 1.0 / math.sqrt(fan_in)
        return jax.random.uniform(k, (1, fan_out), jnp.float32, -bound, bound)

    return {
        "w_f":  xavier_uniform(ks[0], in_dim, hidden),
        "b_f":  torch_bias(ks[1], in_dim, hidden),
        "w_mu": torch_default(ks[2], hidden, n_out),
        "b_mu": torch_bias(ks[3], hidden, n_out),
        "w_var": torch_default(ks[4], hidden, n_out),
        "b_var": torch_bias(ks[5], hidden, n_out),
        "w_c":  torch_default(ks[6], hidden, 1),
        "b_c":  torch_bias(ks[7], hidden, 1),
    }
    # TODO(synk): save()/load() (torch checkpoint I/O) is host-side and not part
    # of the forward pass; not translated.


def _reference(x, p):
    h = jnp.maximum(x @ p["w_f"] + p["b_f"], 0.0)
    mu = jnp.tanh(h @ p["w_mu"] + p["b_mu"])
    v = h @ p["w_var"] + p["b_var"]
    var = jnp.where(v > 20.0, v, jnp.log1p(jnp.exp(jnp.minimum(v, 20.0))))
    critic = h @ p["w_c"] + p["b_c"]
    return mu, var, critic


if __name__ == "__main__":
    key = jax.random.PRNGKey(0)
    k_param, k_x, k_x2 = jax.random.split(key, 3)

    # LunarLanderContinuous-like shapes: state dim 8, 2 continuous actions.
    B, IN_DIM, N_OUT = 8, 8, 2
    params = init_params(k_param, IN_DIM, N_OUT)
    fused = fuse_params(params)   # built once, reused for every forward call

    # Tiny-batch case (single 8-row tile, no over-padding).
    x_small = jax.random.normal(k_x, (B, IN_DIM), jnp.float32)
    mu, var, critic = a2c_forward(x_small, fused)
    jax.block_until_ready((mu, var, critic))
    mu_r, var_r, critic_r = _reference(x_small, params)
    assert mu.shape == (B, N_OUT) and var.shape == (B, N_OUT) and critic.shape == (B, 1)
    assert jnp.allclose(mu, mu_r, atol=1e-5, rtol=1e-5)
    assert jnp.allclose(var, var_r, atol=1e-5, rtol=1e-5)
    assert jnp.allclose(critic, critic_r, atol=1e-5, rtol=1e-5)

    # Rollout-sized batch: 300 rows -> one 304-row tile (minimal padding).
    B2 = 300
    x_big = jax.random.normal(k_x2, (B2, IN_DIM), jnp.float32)
    mu2, var2, critic2 = a2c_forward(x_big, fused)
    jax.block_until_ready((mu2, var2, critic2))
    mu2_r, var2_r, critic2_r = _reference(x_big, params)
    assert mu2.shape == (B2, N_OUT) and var2.shape == (B2, N_OUT) and critic2.shape == (B2, 1)
    assert jnp.allclose(mu2, mu2_r, atol=1e-5, rtol=1e-5)
    assert jnp.allclose(var2, var2_r, atol=1e-5, rtol=1e-5)
    assert jnp.allclose(critic2, critic2_r, atol=1e-5, rtol=1e-5)

    # v7x-style split: two parallel 152-row tiles (exercises grid > 1 path).
    mu3, var3, critic3 = a2c_forward(x_big, fused, min_tiles=2)
    jax.block_until_ready((mu3, var3, critic3))
    assert jnp.allclose(mu3, mu2_r, atol=1e-5, rtol=1e-5)
    assert jnp.allclose(var3, var2_r, atol=1e-5, rtol=1e-5)
    assert jnp.allclose(critic3, critic2_r, atol=1e-5, rtol=1e-5)

    # Packed-output path (single slice, no per-head wrapper slices).
    packed = a2c_forward(x_big, fused, split=False)
    jax.block_until_ready(packed)
    assert packed.shape == (B2, 2 * N_OUT + 1)
    assert jnp.allclose(packed[:, :N_OUT], mu2_r, atol=1e-5, rtol=1e-5)

    print("KERNEL_OK")
</pallas_src>

<mosaic_0001>
module attributes {stable_mosaic.version = 11 : i64} {
  func.func @_a2c_kernel(%arg0: i32, %arg1: memref<8x8xf32, #tpu.memory_space<vmem>>, %arg2: memref<8x128xf32, #tpu.memory_space<vmem>>, %arg3: memref<1x128xf32, #tpu.memory_space<vmem>>, %arg4: memref<128x8xf32, #tpu.memory_space<vmem>>, %arg5: memref<1x8xf32, #tpu.memory_space<vmem>>, %arg6: memref<8x8xf32, #tpu.memory_space<vmem>>) attributes {dimension_semantics = [#tpu.dimension_semantics<parallel>], iteration_bounds = array<i64: 1>, scalar_prefetch = 0 : i64, scratch_operands = 0 : i64, tpu.core_type = #tpu.core_type<tc>, window_params = [{transform_indices = @transform_0, window_bounds = array<i64: 8, 8>}, {pipeline_mode = #tpu.pipeline_mode<synchronous>, transform_indices = @transform_1, window_bounds = array<i64: 8, 128>}, {pipeline_mode = #tpu.pipeline_mode<synchronous>, transform_indices = @transform_2, window_bounds = array<i64: 1, 128>}, {pipeline_mode = #tpu.pipeline_mode<synchronous>, transform_indices = @transform_3, window_bounds = array<i64: 128, 8>}, {pipeline_mode = #tpu.pipeline_mode<synchronous>, transform_indices = @transform_4, window_bounds = array<i64: 1, 8>}, {transform_indices = @transform_5, window_bounds = array<i64: 8, 8>}]} {
    %c0 = arith.constant 0 : index
    %c0_0 = arith.constant 0 : index
    %0 = vector.load %arg1[%c0, %c0_0] : memref<8x8xf32, #tpu.memory_space<vmem>>, vector<8x8xf32>
    %c0_1 = arith.constant 0 : index
    %c0_2 = arith.constant 0 : index
    %1 = vector.load %arg2[%c0_1, %c0_2] : memref<8x128xf32, #tpu.memory_space<vmem>>, vector<8x128xf32>
    %cst = arith.constant dense<0.000000e+00> : vector<8x128xf32>
    %2 = tpu.matmul %0, %1, %cst {dimension_numbers = #tpu.dot_dimension_numbers<[1], [0], [0], [1], [0, 0, 1, 1], [], []>} : vector<8x8xf32>, vector<8x128xf32>, vector<8x128xf32> -> vector<8x128xf32>
    %c0_3 = arith.constant 0 : index
    %c0_4 = arith.constant 0 : index
    %3 = vector.load %arg3[%c0_3, %c0_4] : memref<1x128xf32, #tpu.memory_space<vmem>>, vector<1x128xf32>
    %4 = vector.broadcast %3 : vector<1x128xf32> to vector<8x128xf32>
    %5 = arith.addf %2, %4 : vector<8x128xf32>
    %cst_5 = arith.constant 0.000000e+00 : f32
    %6 = vector.broadcast %cst_5 : f32 to vector<8x128xf32>
    %7 = arith.maximumf %5, %6 : vector<8x128xf32>
    %c0_6 = arith.constant 0 : index
    %c0_7 = arith.constant 0 : index
    %8 = vector.load %arg4[%c0_6, %c0_7] : memref<128x8xf32, #tpu.memory_space<vmem>>, vector<128x8xf32>
    %cst_8 = arith.constant dense<0.000000e+00> : vector<8x8xf32>
    %9 = tpu.matmul %7, %8, %cst_8 {dimension_numbers = #tpu.dot_dimension_numbers<[1], [0], [0], [1], [0, 0, 1, 1], [], []>} : vector<8x128xf32>, vector<128x8xf32>, vector<8x8xf32> -> vector<8x8xf32>
    %c0_9 = arith.constant 0 : index
    %c0_10 = arith.constant 0 : index
    %10 = vector.load %arg5[%c0_9, %c0_10] : memref<1x8xf32, #tpu.memory_space<vmem>>, vector<1x8xf32>
    %11 = vector.broadcast %10 : vector<1x8xf32> to vector<8x8xf32>
    %12 = arith.addf %9, %11 : vector<8x8xf32>
    %13 = tpu.iota {dimensions = array<i32: 1>} : vector<8x8xi32>
    %14 = math.tanh %12 : vector<8x8xf32>
    %cst_11 = arith.constant 2.000000e+01 : f32
    %15 = vector.broadcast %cst_11 : f32 to vector<8x8xf32>
    %16 = arith.cmpf ogt, %12, %15 : vector<8x8xf32>
    %cst_12 = arith.constant 2.000000e+01 : f32
    %17 = vector.broadcast %cst_12 : f32 to vector<8x8xf32>
    %18 = arith.minimumf %12, %17 : vector<8x8xf32>
    %19 = math.exp %18 : vector<8x8xf32>
    %20 = math.log1p %19 : vector<8x8xf32>
    %21 = arith.select %16, %12, %20 : vector<8x8xi1>, vector<8x8xf32>
    %c2_i32 = arith.constant 2 : i32
    %22 = vector.broadcast %c2_i32 : i32 to vector<8x8xi32>
    %23 = arith.cmpi slt, %13, %22 : vector<8x8xi32>
    %c4_i32 = arith.constant 4 : i32
    %24 = vector.broadcast %c4_i32 : i32 to vector<8x8xi32>
    %25 = arith.cmpi slt, %13, %24 : vector<8x8xi32>
    %26 = arith.select %25, %21, %12 : vector<8x8xi1>, vector<8x8xf32>
    %27 = arith.select %23, %14, %26 : vector<8x8xi1>, vector<8x8xf32>
    %c0_13 = arith.constant 0 : index
    %c0_14 = arith.constant 0 : index
    %28 = vector.load %arg6[%c0_13, %c0_14] : memref<8x8xf32, #tpu.memory_space<vmem>>, vector<8x8xf32>
    tpu.vector_store %arg6[%c0_13, %c0_14], %27 {strides = array<i32>} : memref<8x8xf32, #tpu.memory_space<vmem>>, vector<8x8xf32>,
    return
  }
  func.func @transform_0(%arg0: i32) -> (i32, i32) {
    %c0_i32 = arith.constant 0 : i32
    %c0_i32_0 = arith.constant 0 : i32
    return %arg0, %c0_i32 : i32, i32
  }
  func.func @transform_1(%arg0: i32) -> (i32, i32) {
    %c0_i32 = arith.constant 0 : i32
    %c0_i32_0 = arith.constant 0 : i32
    %c0_i32_1 = arith.constant 0 : i32
    return %c0_i32, %c0_i32_0 : i32, i32
  }
  func.func @transform_2(%arg0: i32) -> (i32, i32) {
    %c0_i32 = arith.constant 0 : i32
    %c0_i32_0 = arith.constant 0 : i32
    %c0_i32_1 = arith.constant 0 : i32
    return %c0_i32, %c0_i32_0 : i32, i32
  }
  func.func @transform_3(%arg0: i32) -> (i32, i32) {
    %c0_i32 = arith.constant 0 : i32
    %c0_i32_0 = arith.constant 0 : i32
    %c0_i32_1 = arith.constant 0 : i32
    return %c0_i32, %c0_i32_0 : i32, i32
  }
  func.func @transform_4(%arg0: i32) -> (i32, i32) {
    %c0_i32 = arith.constant 0 : i32
    %c0_i32_0 = arith.constant 0 : i32
    %c0_i32_1 = arith.constant 0 : i32
    return %c0_i32, %c0_i32_0 : i32, i32
  }
  func.func @transform_5(%arg0: i32) -> (i32, i32) {
    %c0_i32 = arith.constant 0 : i32
    %c0_i32_0 = arith.constant 0 : i32
    return %arg0, %c0_i32 : i32, i32
  }
}

</mosaic_0001>

<llo_original>
// kernel: tpu_custom_call.1
$region0: #{tpu_custom_call.1}
  #allocation0 [shape = 'u32[]', space=smem, size = 0x4, offset = 0x4, fixed_abs, tag = 'smem constant byte address 0x4 - core index']
  #allocation1 [shape = 'u32[144,128]{1,0:T(1,128)}', space=vmem, size = 0x12000, scoped, tag = 'internal scratch']
  %s0 = inlined_call_operand.vmem [shape: f32[8,8], index: 0, kind: input, shape index: {}]
  %s1 = inlined_call_operand.vmem [shape: f32[8,128], index: 1, kind: input, shape index: {}]
  %s2 = inlined_call_operand.vmem [shape: f32[1,128], index: 2, kind: input, shape index: {}]
  %s3 = inlined_call_operand.vmem [shape: f32[128,8], index: 3, kind: input, shape index: {}]
  %s4 = inlined_call_operand.vmem [shape: f32[1,8], index: 4, kind: input, shape index: {}]
  %s5 = inlined_call_operand.hbm [shape: f32[8,8], index: 5, kind: output, shape index: {}]
  %s6 = sld [smem:[#allocation0]]
  $region30: #{tpu_custom_call.1} parent=0
    _
  %s8 = ssub.s32 1, %s6
  %s9 = scalar_select 0, %s8, %s6
  $region1: #{tpu_custom_call.1} parent=0
    #allocation2 [shape = 'u8[4096]{0}', space=vmem, size = 0x1000, scoped, tag = 'output window, operand 0, single buffered']
    #allocation3 [shape = 's32[1]{0}', space=sflag, size = 0x4, scoped, tag = 'scoped memory for tpu_custom_call.1']
    %10 = vsyncpa [#allocation3], 0
    // Predicated region
    $region2: #{tpu_custom_call.1} parent=1 // pred_check
      _
    $region3: #{tpu_custom_call.1} parent=1 // pred_check_branch
      %12 = sbr.rel (0) target = $region5
    $region4: #{tpu_custom_call.1} parent=1 // pred_region
      _
    $region5: #{tpu_custom_call.1} parent=1 // pred_fallthru
      _
    // Predicated region
    $region6: #{tpu_custom_call.1} parent=1 // pred_check
      _
    $region7: #{tpu_custom_call.1} parent=1 // pred_check_branch
      %14 = sbr.rel (0) target = $region9
    $region8: #{tpu_custom_call.1} parent=1 // pred_region
      _
    $region9: #{tpu_custom_call.1} parent=1 // pred_fallthru
      _
    // Predicated region
    $region10: #{tpu_custom_call.1} parent=1 // pred_check
      _
    $region11: #{tpu_custom_call.1} parent=1 // pred_check_branch
      %16 = sbr.rel (0) target = $region13
    $region12: #{tpu_custom_call.1} parent=1 // pred_region
      _
    $region13: #{tpu_custom_call.1} parent=1 // pred_fallthru
      _
    // Predicated region
    $region14: #{tpu_custom_call.1} parent=1 // pred_check
      _
    $region15: #{tpu_custom_call.1} parent=1 // pred_check_branch
      %18 = sbr.rel (0) target = $region17
    $region16: #{tpu_custom_call.1} parent=1 // pred_region
      _
    $region17: #{tpu_custom_call.1} parent=1 // pred_fallthru
      _
    // Predicated region
    $region18: #{tpu_custom_call.1} parent=1 // pred_check
      _
    $region19: #{tpu_custom_call.1} parent=1 // pred_check_branch
      %20 = sbr.rel (0) target = $region21
    $region20: #{tpu_custom_call.1} parent=1 // pred_region
      _
    $region21: #{tpu_custom_call.1} parent=1 // pred_fallthru
      _
    %v21 = vld [vmem:[%s0] sm:$0xff]
    %v22 = vld [vmem:[%s1] sm:$0xff]
    %v23 = vld [vmem:[%s2] sm:$0x1]
    %v25 = vlaneseq
    %v26 = vshrl.u32 %v25, 7
    %v27 = vsub.s32 0, %v26
    %v28 = vrot.slane %v23, %v27
    %vm30 = vcmask 64512
    %v32 = vsel %vm30, %v21, 0
    %34 = vmatprep.subr.mxu0 0.0
    %35 = vmatpush1.msra.mxu0 %v22
    %36 = vmatprep.subr.mxu0 0.0
    %37 = vmatpush1.msra.mxu0 0.0
    %38 = vmatprep.subr.mxu0 0.0
    %39 = vmatpush1.msra.mxu0 0.0
    %40 = vmatprep.subr.mxu0 0.0
    %41 = vmatpush1.msra.mxu0 0.0
    %42 = vmatprep.subr.mxu0 0.0
    %43 = vmatpush1.msra.mxu0 0.0
    %44 = vmatprep.subr.mxu0 0.0
    %45 = vmatpush1.msra.mxu0 0.0
    %46 = vmatprep.subr.mxu0 0.0
    %47 = vmatpush1.msra.mxu0 0.0
    %48 = vmatprep.subr.mxu0 0.0
    %49 = vmatpush1.msra.mxu0 0.0
    %50 = vmatprep.subr.mxu0 0.0
    %51 = vmatpush1.msra.mxu0 0.0
    %52 = vmatprep.subr.mxu0 0.0
    %53 = vmatpush1.msra.mxu0 0.0
    %54 = vmatprep.subr.mxu0 0.0
    %55 = vmatpush1.msra.mxu0 0.0
    %56 = vmatprep.subr.mxu0 0.0
    %57 = vmatpush1.msra.mxu0 0.0
    %58 = vmatprep.subr.mxu0 0.0
    %59 = vmatpush1.msra.mxu0 0.0
    %60 = vmatprep.subr.mxu0 0.0
    %61 = vmatpush1.msra.mxu0 0.0
    %62 = vmatprep.subr.mxu0 0.0
    %63 = vmatpush1.msra.mxu0 0.0
    %64 = vmatprep.subr.mxu0 0.0
    %65 = vmatpush1.msra.mxu0 0.0
    %66 = vmatprep.subr.mxu0 0.0
    %67 = vmatpush1.msra.mxu0 0.0
    %68 = vmatprep.subr.mxu0 0.0
    %69 = vmatpush1.msra.mxu0 0.0
    %70 = vmatprep.subr.mxu0 0.0
    %71 = vmatpush1.msra.mxu0 0.0
    %72 = vmatprep.subr.mxu0 0.0
    %73 = vmatpush1.msra.mxu0 0.0
    %74 = vmatprep.subr.mxu0 0.0
    %75 = vmatpush1.msra.mxu0 0.0
    %76 = vmatprep.subr.mxu0 0.0
    %77 = vmatpush1.msra.mxu0 0.0
    %78 = vmatprep.subr.mxu0 0.0
    %79 = vmatpush1.msra.mxu0 0.0
    %80 = vmatprep.subr.mxu0 0.0
    %81 = vmatpush1.msra.mxu0 0.0
    %82 = vmatprep.subr.mxu0 0.0
    %83 = vmatpush1.msra.mxu0 0.0
    %84 = vmatprep.subr.mxu0 0.0
    %85 = vmatpush1.msra.mxu0 0.0
    %86 = vmatprep.subr.mxu0 0.0
    %87 = vmatpush1.msra.mxu0 0.0
    %88 = vmatprep.subr.mxu0 0.0
    %89 = vmatpush1.msra.mxu0 0.0
    %90 = vmatprep.subr.mxu0 0.0
    %91 = vmatpush1.msra.mxu0 0.0
    %92 = vmatprep.subr.mxu0 0.0
    %93 = vmatpush1.msra.mxu0 0.0
    %94 = vmatprep.subr.mxu0 0.0
    %95 = vmatpush1.msra.mxu0 0.0
    %96 = vmatprep.subr.mxu0 0.0
    %97 = vmatpush1.msra.mxu0 0.0
    %98 = vmatprep.mubr.f32.mxu0 0.0
    %99 = vmatmul.mubr.f32.gmra.mrb[0].mxu0 %v32
    %v100 = vpop.f32.mrb[0].mxu0
    %v101 = vadd.f32 %v28, %v100
    %v102 = vpop.f32.mrb[0].mxu0
    %103 = vdwg.mxu0
    %v104 = vmax.f32 %v101, 0.0
    %v105 = vld [vmem:[%s3] sm:$0xff]
    %v106 = vld [vmem:[%s3 + $0x8] sm:$0xff]
    %v107 = vld [vmem:[%s3 + $0x10] sm:$0xff]
    %v108 = vld [vmem:[%s3 + $0x18] sm:$0xff]
    %v109 = vld [vmem:[%s3 + $0x20] sm:$0xff]
    %v110 = vld [vmem:[%s3 + $0x28] sm:$0xff]
    %v111 = vld [vmem:[%s3 + $0x30] sm:$0xff]
    %v112 = vld [vmem:[%s3 + $0x38] sm:$0xff]
    %v113 = vld [vmem:[%s3 + $0x40] sm:$0xff]
    %v114 = vld [vmem:[%s3 + $0x48] sm:$0xff]
    %v115 = vld [vmem:[%s3 + $0x50] sm:$0xff]
    %v116 = vld [vmem:[%s3 + $0x58] sm:$0xff]
    %v117 = vld [vmem:[%s3 + $0x60] sm:$0xff]
    %v118 = vld [vmem:[%s3 + $0x68] sm:$0xff]
    %v119 = vld [vmem:[%s3 + $0x70] sm:$0xff]
    %v120 = vld [vmem:[%s3 + $0x78] sm:$0xff]
    %v121 = vld [vmem:[%s4] sm:$0x1]
    %v123 = vlaneseq
    %v124 = vshrl.u32 %v123, 7
    %v125 = vsub.s32 0, %v124
    %v126 = vrot.slane %v121, %v125
    %128 = vmatprep.subr.mxu0 0.0
    %129 = vmatpush1.msra.mxu0 %v105
    %130 = vmatprep.subr.mxu0 0.0
    %131 = vmatpush1.msra.mxu0 %v106
    %132 = vmatprep.subr.mxu0 0.0
    %133 = vmatpush1.msra.mxu0 %v107
    %134 = vmatprep.subr.mxu0 0.0
    %135 = vmatpush1.msra.mxu0 %v108
    %136 = vmatprep.subr.mxu0 0.0
    %137 = vmatpush1.msra.mxu0 %v109
    %138 = vmatprep.subr.mxu0 0.0
    %139 = vmatpush1.msra.mxu0 %v110
    %140 = vmatprep.subr.mxu0 0.0
    %141 = vmatpush1.msra.mxu0 %v111
    %142 = vmatprep.subr.mxu0 0.0
    %143 = vmatpush1.msra.mxu0 %v112
    %144 = vmatprep.subr.mxu0 0.0
    %145 = vmatpush1.msra.mxu0 %v113
    %146 = vmatprep.subr.mxu0 0.0
    %147 = vmatpush1.msra.mxu0 %v114
    %148 = vmatprep.subr.mxu0 0.0
    %149 = vmatpush1.msra.mxu0 %v115
    %150 = vmatprep.subr.mxu0 0.0
    %151 = vmatpush1.msra.mxu0 %v116
    %152 = vmatprep.subr.mxu0 0.0
    %153 = vmatpush1.msra.mxu0 %v117
    %154 = vmatprep.subr.mxu0 0.0
    %155 = vmatpush1.msra.mxu0 %v118
    %156 = vmatprep.subr.mxu0 0.0
    %157 = vmatpush1.msra.mxu0 %v119
    %158 = vmatprep.subr.mxu0 0.0
    %159 = vmatpush1.msra.mxu0 %v120
    %160 = vmatprep.subr.mxu0 0.0
    %161 = vmatpush1.msra.mxu0 0.0
    %162 = vmatprep.subr.mxu0 0.0
    %163 = vmatpush1.msra.mxu0 0.0
    %164 = vmatprep.subr.mxu0 0.0
    %165 = vmatpush1.msra.mxu0 0.0
    %166 = vmatprep.subr.mxu0 0.0
    %167 = vmatpush1.msra.mxu0 0.0
    %168 = vmatprep.subr.mxu0 0.0
    %169 = vmatpush1.msra.mxu0 0.0
    %170 = vmatprep.subr.mxu0 0.0
    %171 = vmatpush1.msra.mxu0 0.0
    %172 = vmatprep.subr.mxu0 0.0
    %173 = vmatpush1.msra.mxu0 0.0
    %174 = vmatprep.subr.mxu0 0.0
    %175 = vmatpush1.msra.mxu0 0.0
    %176 = vmatprep.subr.mxu0 0.0
    %177 = vmatpush1.msra.mxu0 0.0
    %178 = vmatprep.subr.mxu0 0.0
    %179 = vmatpush1.msra.mxu0 0.0
    %180 = vmatprep.subr.mxu0 0.0
    %181 = vmatpush1.msra.mxu0 0.0
    %182 = vmatprep.subr.mxu0 0.0
    %183 = vmatpush1.msra.mxu0 0.0
    %184 = vmatprep.subr.mxu0 0.0
    %185 = vmatpush1.msra.mxu0 0.0
    %186 = vmatprep.subr.mxu0 0.0
    %187 = vmatpush1.msra.mxu0 0.0
    %188 = vmatprep.subr.mxu0 0.0
    %189 = vmatpush1.msra.mxu0 0.0
    %190 = vmatprep.subr.mxu0 0.0
    %191 = vmatpush1.msra.mxu0 0.0
    %192 = vmatprep.mubr.f32.mxu0 0.0
    %193 = vmatmul.mubr.f32.gmra.mrb[0].mxu0 %v104
    %v194 = vpop.f32.mrb[0].mxu0
    %v195 = vadd.f32 %v126, %v194
    %v196 = vpop.f32.mrb[0].mxu0
    %197 = vdwg.mxu0
    %v198 = vlaneseq
    %v199 = vand.u32 %v198, 127
    %v200 = vtanh.pop %v195
    %vm201 = vcmp.gt.f32.partialorder %v195, 20.0
    %v202 = vmin.f32 %v195, 20.0
    %v203 = vmul.f32 %v202, 1.442695
    %v204 = vpow.pop %v203
    %v205 = vadd.f32 %v204, 1.0
    %v206 = vlog2.pop %v205
    %v207 = vmul.f32 %v206, 0.6931472
    %v208 = vmul.f32 -0.5, %v204
    %v209 = vadd.f32 %v208, 1.0
    %v210 = vmul.f32 %v209, %v204
    %v211 = vand.u32 2147483647, %v204
    %vm212 = vcmp.lt.f32.partialorder %v211, 0.0004427343
    %v213 = vsel %vm212, %v210, %v207
    %v214 = vsel %vm201, %v195, %v213
    %vm215 = vcmp.lt.s32.totalorder %v199, 2
    %vm216 = vcmp.lt.s32.totalorder %v199, 4
    %v217 = vsel %vm216, %v214, %v195
    %v218 = vsel %vm215, %v200, %v217
    %219 = vst.msk [vmem:[#allocation2] sm:$0xff] %vm30, %v218
    // Predicated region
    $region22: #{tpu_custom_call.1} parent=1 // pred_check
      _
    $region23: #{tpu_custom_call.1} parent=1 // pred_check_branch
      %221 = sbr.rel (0) target = $region25
    $region24: #{tpu_custom_call.1} parent=1 // pred_region
      %s223 = ssub.s32 128, 128
      %224 = vsyncadd [#allocation3], %s223
      %s226 = sshll.u32 [#allocation2], 4
      %s227 = int_to_ptr.vmem [resolvable:$true] %s226
      %229 = dma.vmem_to_hbm [thread:$0]  %s227, 128, %s5, [#allocation3]
    $region25: #{tpu_custom_call.1} parent=1 // pred_fallthru
      _
    // Predicated region
    $region26: #{tpu_custom_call.1} parent=1 // pred_check
      _
    $region27: #{tpu_custom_call.1} parent=1 // pred_check_branch
      %231 = sbr.rel (0) target = $region29
    $region28: #{tpu_custom_call.1} parent=1 // pred_region
      %232 = dma.done [#allocation3], 128
    $region29: #{tpu_custom_call.1} parent=1 // pred_fallthru
      _
    %233 = vsyncpa [#allocation3], 1

</llo_original>
